<compile_context>
chip_gen: v5e
topology: v5e:2x2
jax: 0.10.0
libtpu: 0.0.40
codegen_flags: <defaults>
</compile_context>

<pallas_src>
import functools

import jax
import jax.numpy as jnp
from jax import lax
from jax.experimental import pallas as pl
from jax.experimental.pallas import tpu as pltpu


IN_CHANNELS = 3 * 40          # 120
N_NEURONS = 64
OUT_CHANNELS = 4
OUT_PAD = 8                   # lane/sublane-friendly padded output channel dim


def _kaiming_uniform(key, shape, fan_in):
    # torch.nn.init.kaiming_uniform_(..., nonlinearity='relu'): bound = sqrt(6/fan_in)
    bound = (6.0 / fan_in) ** 0.5
    return jax.random.uniform(key, shape, jnp.float32, -bound, bound)


def _default_linear_bias(key, shape, fan_in):
    # torch.nn.Linear default bias init: U(-1/sqrt(fan_in), 1/sqrt(fan_in))
    bound = 1.0 / (fan_in ** 0.5)
    return jax.random.uniform(key, shape, jnp.float32, -bound, bound)


def init_params(key, n_hidden_layers):
    """Deterministic parameter init matching the module's shapes (f32, torch layout)."""
    assert n_hidden_layers >= 2, "kernel below assumes >= 1 hidden->hidden layer"
    keys = jax.random.split(key, 2 * (n_hidden_layers + 1))
    ki = iter(keys)

    w1 = _kaiming_uniform(next(ki), (IN_CHANNELS, N_NEURONS), IN_CHANNELS)
    b1 = _default_linear_bias(next(ki), (1, N_NEURONS), IN_CHANNELS)

    wh, bh = [], []
    for _ in range(n_hidden_layers - 1):
        wh.append(_kaiming_uniform(next(ki), (N_NEURONS, N_NEURONS), N_NEURONS))
        bh.append(_default_linear_bias(next(ki), (1, N_NEURONS), N_NEURONS))
    wh = jnp.stack(wh, axis=0)                      # (H-1, 64, 64)
    bh = jnp.stack(bh, axis=0)                      # (H-1, 1, 64)

    wo = _kaiming_uniform(next(ki), (N_NEURONS, OUT_CHANNELS), N_NEURONS)
    bo = _default_linear_bias(next(ki), (1, OUT_CHANNELS), N_NEURONS)

    return dict(w1=w1, b1=b1, wh=wh, bh=bh, wo=wo, bo=bo)


def _silu_to_bf16(h, act_dtype):
    """SiLU on a channels-first f32 accumulator tile; returns bf16 for the next MXU dot.

    act_dtype=f32 (default, exact-on-all-chips).  act_dtype=bf16 halves EUP/VALU
    pressure on v6e/v7x (they have bf16 VPU/EUP); keep f32 on v5e.
    The reciprocal is exact (approx=False) but still lands on the EUP slot.
    exp(-h) overflowing to +inf is fine: 1/(1+inf) -> 0, finite*0 -> 0.
    """
    h = h.astype(act_dtype)
    s = h * pl.reciprocal(jnp.exp(-h) + 1.0, approx=False)
    return s.astype(jnp.bfloat16)


def nerf_mlp_kernel(x_ref, w1t_ref, b1t_ref, wht_ref, bht_ref, wot_ref, bot_ref,
                    o_ref, *, n_hidden_layers, act_dtype):
    # x_ref  : (TM, 120) f32-or-bf16   w1t_ref: (64, 120) bf16   b1t_ref: (64, 1) f32
    # wht_ref: (H-1, 64, 64) bf16      bht_ref: (H-1, 64, 1) f32
    # wot_ref: (8, 64) bf16 (rows 4..7 zero)   bot_ref: (8, 1) f32   o_ref: (8, TM) f32
    #
    # Channels-first activation chain: rows live on the 128-lane axis the whole
    # way, so elementwise vregs are fully populated and the output store is an
    # unmasked, lane-dense (8,128)-tiled vst.
    xb = x_ref[...]
    if xb.dtype != jnp.bfloat16:          # bf16 fast path: no cast needed
        xb = xb.astype(jnp.bfloat16)

    # layer 0: (64,120) . (TM,120)^T -> (64, TM)  (NT dot_general; no in-kernel transpose)
    h = lax.dot_general(w1t_ref[...], xb,
                        dimension_numbers=(((1,), (1,)), ((), ())),
                        preferred_element_type=jnp.float32)
    hb = _silu_to_bf16(h + b1t_ref[...], act_dtype)

    # static Python loop over hidden layers (trip count fixed at trace time)
    for i in range(n_hidden_layers - 1):
        h = jnp.dot(wht_ref[i], hb, preferred_element_type=jnp.float32)   # (64, TM)
        hb = _silu_to_bf16(h + bht_ref[i], act_dtype)

    # output layer, channel dim pre-padded to 8 -> unmasked (8, TM) store
    out = jnp.dot(wot_ref[...], hb, preferred_element_type=jnp.float32) + bot_ref[...]
    o_ref[...] = out.astype(o_ref.dtype)


def _round_up(x, m):
    return (x + m - 1) // m * m


def nerf_mlp_forward(x, params, n_hidden_layers, *, tile_m=4096,
                     silu_dtype=jnp.float32):
    """Pallas implementation of NeRFMLP.forward.

    x: (..., IN_CHANNELS), float32 or bfloat16 (bf16 halves the HBM-bound input stream).
    returns {'density': (N, 1), 'features': (N, 3)} with N = prod(leading dims).
    silu_dtype: jnp.bfloat16 is a worthwhile opt-in on v6e/v7x; keep f32 on v5e.
    """
    x2 = x.reshape(-1, x.shape[-1])
    if x2.dtype not in (jnp.float32, jnp.bfloat16):
        x2 = x2.astype(jnp.float32)
    n_rows = x2.shape[0]

    # Adaptive row tile: large to amortize the ~0.35us/step pipeline overhead,
    # but capped so the grid has >= 2 steps (v7x has 2 TensorCores and
    # "parallel" semantics only help with >= 2 grid iterations), and never
    # oversized for tiny inputs.  Always a multiple of 128 (lane dim).
    tm = min(tile_m, max(128, _round_up(-(-n_rows // 2), 128)))
    tm = max(128, _round_up(tm, 128))
    grid = (pl.cdiv(n_rows, tm),)      # partial boundary block; no jnp.pad copy
    n_stack = n_hidden_layers - 1

    # Channels-first bf16 weights for the MXU (f32 biases; f32 accumulation in-kernel).
    w1t = params["w1"].T.astype(jnp.bfloat16)                             # (64, 120)
    b1t = params["b1"].T.astype(jnp.float32)                              # (64, 1)
    wht = jnp.transpose(params["wh"], (0, 2, 1)).astype(jnp.bfloat16)     # (H-1, 64, 64)
    bht = jnp.transpose(params["bh"], (0, 2, 1)).astype(jnp.float32)      # (H-1, 64, 1)
    # Pad the output layer 4 -> 8 channels (tiny) so the store is unmasked.
    wot = jnp.pad(params["wo"].T.astype(jnp.bfloat16),
                  ((0, OUT_PAD - OUT_CHANNELS), (0, 0)))                  # (8, 64)
    bot = jnp.pad(params["bo"].T.astype(jnp.float32),
                  ((0, OUT_PAD - OUT_CHANNELS), (0, 0)))                  # (8, 1)

    kernel = functools.partial(nerf_mlp_kernel,
                               n_hidden_layers=n_hidden_layers,
                               act_dtype=silu_dtype)
    full = lambda shape: pl.BlockSpec(shape, lambda i: (0,) * len(shape))

    feats_t = pl.pallas_call(
        kernel,
        out_shape=jax.ShapeDtypeStruct((OUT_PAD, n_rows), jnp.float32),
        grid_spec=pltpu.PrefetchScalarGridSpec(
            num_scalar_prefetch=0,
            grid=grid,
            in_specs=[
                # x tile; on v5e consider pipeline_mode=pl.Buffered(3) if the
                # x DMA shows up exposed in xprof.
                pl.BlockSpec((tm, IN_CHANNELS), lambda i: (i, 0)),
                full((N_NEURONS, IN_CHANNELS)),                      # w1^T
                full((N_NEURONS, 1)),                                # b1^T
                full((n_stack, N_NEURONS, N_NEURONS)),               # wh^T
                full((n_stack, N_NEURONS, 1)),                       # bh^T
                full((OUT_PAD, N_NEURONS)),                          # wo^T (padded)
                full((OUT_PAD, 1)),                                  # bo^T (padded)
            ],
            out_specs=pl.BlockSpec((OUT_PAD, tm), lambda i: (0, i)),  # lane-dense store
        ),
        compiler_params=pltpu.CompilerParams(
            dimension_semantics=("parallel",),
            # Raises v5e's 16 MiB default scoped VMEM; ample for tile_m up to
            # ~8192 while staying well under v7x's 64 MiB physical VMEM.
            vmem_limit_bytes=48 * 1024 * 1024,
        ),
    )(x2, w1t, b1t, wht, bht, wot, bot)

    feats = feats_t[:OUT_CHANNELS, :].T                               # (N, 4), tiny XLA op
    return {"density": feats[:, 0:1], "features": feats[:, 1:4]}


def nerf_mlp_reference(x, params, n_hidden_layers):
    """Pure-JAX reference mirroring the kernel's bf16-operand / f32-accum math."""
    bf = jnp.bfloat16
    h = x.reshape(-1, x.shape[-1]).astype(jnp.float32)
    h = jnp.dot(h.astype(bf), params["w1"].astype(bf),
                preferred_element_type=jnp.float32) + params["b1"]
    h = jax.nn.silu(h)
    for i in range(n_hidden_layers - 1):
        h = jnp.dot(h.astype(bf), params["wh"][i].astype(bf),
                    preferred_element_type=jnp.float32) + params["bh"][i]
        h = jax.nn.silu(h)
    feats = jnp.dot(h.astype(bf), params["wo"].astype(bf),
                    preferred_element_type=jnp.float32) + params["bo"]
    return {"density": feats[:, 0:1], "features": feats[:, 1:4]}


def _check(out, ref, n, tol=4e-2):
    assert out["density"].shape == (n, 1)
    assert out["features"].shape == (n, 3)
    for name in ("density", "features"):
        assert bool(jnp.all(jnp.isfinite(out[name]))), name
        err = float(jnp.max(jnp.abs(out[name] - ref[name])))
        # bf16 MXU operands + f32 accumulation + exact SiLU vs bf16-matched reference.
        assert err < tol, (name, err)


if __name__ == "__main__":
    n_hidden_layers = 3
    key = jax.random.PRNGKey(0)
    k_param, k_x, k_x2 = jax.random.split(key, 3)

    params = init_params(k_param, n_hidden_layers)

    # small input: (batch=2, points=128, channels=120) -> flattened N=256 rows
    x = jax.random.normal(k_x, (2, 128, IN_CHANNELS), dtype=jnp.float32)
    out = nerf_mlp_forward(x, params, n_hidden_layers)
    out = jax.tree_util.tree_map(jax.block_until_ready, out)
    _check(out, nerf_mlp_reference(x, params, n_hidden_layers), 256)

    # ragged row count exercises the partial boundary block (no jnp.pad path)
    x_ragged = jax.random.normal(k_x2, (300, IN_CHANNELS), dtype=jnp.float32)
    out_r = nerf_mlp_forward(x_ragged, params, n_hidden_layers)
    out_r = jax.tree_util.tree_map(jax.block_until_ready, out_r)
    _check(out_r, nerf_mlp_reference(x_ragged, params, n_hidden_layers), 300)

    print("KERNEL_OK")
</pallas_src>

<mosaic_0001>
module attributes {stable_mosaic.version = 11 : i64} {
  func.func @nerf_mlp_kernel(%arg0: i32, %arg1: memref<128x120xf32, #tpu.memory_space<vmem>>, %arg2: memref<64x120xbf16, #tpu.memory_space<vmem>>, %arg3: memref<64x1xf32, #tpu.memory_space<vmem>>, %arg4: memref<2x64x64xbf16, #tpu.memory_space<vmem>>, %arg5: memref<2x64x1xf32, #tpu.memory_space<vmem>>, %arg6: memref<8x64xbf16, #tpu.memory_space<vmem>>, %arg7: memref<8x1xf32, #tpu.memory_space<vmem>>, %arg8: memref<8x128xf32, #tpu.memory_space<vmem>>) attributes {dimension_semantics = [#tpu.dimension_semantics<parallel>], iteration_bounds = array<i64: 2>, scalar_prefetch = 0 : i64, scratch_operands = 0 : i64, tpu.core_type = #tpu.core_type<tc>, window_params = [{transform_indices = @transform_0, window_bounds = array<i64: 128, 120>}, {pipeline_mode = #tpu.pipeline_mode<synchronous>, transform_indices = @transform_1, window_bounds = array<i64: 64, 120>}, {pipeline_mode = #tpu.pipeline_mode<synchronous>, transform_indices = @transform_2, window_bounds = array<i64: 64, 1>}, {pipeline_mode = #tpu.pipeline_mode<synchronous>, transform_indices = @transform_3, window_bounds = array<i64: 2, 64, 64>}, {pipeline_mode = #tpu.pipeline_mode<synchronous>, transform_indices = @transform_4, window_bounds = array<i64: 2, 64, 1>}, {pipeline_mode = #tpu.pipeline_mode<synchronous>, transform_indices = @transform_5, window_bounds = array<i64: 8, 64>}, {pipeline_mode = #tpu.pipeline_mode<synchronous>, transform_indices = @transform_6, window_bounds = array<i64: 8, 1>}, {transform_indices = @transform_7, window_bounds = array<i64: 8, 128>}]} {
    %c0 = arith.constant 0 : index
    %c0_0 = arith.constant 0 : index
    %0 = vector.load %arg1[%c0, %c0_0] : memref<128x120xf32, #tpu.memory_space<vmem>>, vector<128x120xf32>
    %1 = arith.truncf %0 : vector<128x120xf32> to vector<128x120xbf16>
    %c0_1 = arith.constant 0 : index
    %c0_2 = arith.constant 0 : index
    %2 = vector.load %arg2[%c0_1, %c0_2] : memref<64x120xbf16, #tpu.memory_space<vmem>>, vector<64x120xbf16>
    %cst = arith.constant dense<0.000000e+00> : vector<64x128xf32>
    %3 = tpu.matmul %2, %1, %cst {dimension_numbers = #tpu.dot_dimension_numbers<[1], [1], [0], [0], [0, 0, 1, 0], [], []>} : vector<64x120xbf16>, vector<128x120xbf16>, vector<64x128xf32> -> vector<64x128xf32>
    %c0_3 = arith.constant 0 : index
    %c0_4 = arith.constant 0 : index
    %4 = vector.load %arg3[%c0_3, %c0_4] : memref<64x1xf32, #tpu.memory_space<vmem>>, vector<64x1xf32>
    %5 = vector.broadcast %4 : vector<64x1xf32> to vector<64x128xf32>
    %6 = arith.addf %3, %5 : vector<64x128xf32>
    %cst_5 = arith.constant 0.000000e+00 : f32
    %7 = vector.broadcast %cst_5 : f32 to vector<64x128xf32>
    %8 = arith.subf %7, %6 : vector<64x128xf32>
    %9 = math.exp %8 : vector<64x128xf32>
    %cst_6 = arith.constant 1.000000e+00 : f32
    %10 = vector.broadcast %cst_6 : f32 to vector<64x128xf32>
    %11 = arith.addf %9, %10 : vector<64x128xf32>
    %12 = tpu.reciprocal %11 : vector<64x128xf32> -> vector<64x128xf32>
    %13 = arith.mulf %6, %12 : vector<64x128xf32>
    %14 = arith.truncf %13 : vector<64x128xf32> to vector<64x128xbf16>
    %c0_7 = arith.constant 0 : index
    %c0_8 = arith.constant 0 : index
    %c0_9 = arith.constant 0 : index
    %15 = vector.load %arg4[%c0_7, %c0_8, %c0_9] : memref<2x64x64xbf16, #tpu.memory_space<vmem>>, vector<1x64x64xbf16>
    %16 = vector.shape_cast %15 : vector<1x64x64xbf16> to vector<64x64xbf16>
    %cst_10 = arith.constant dense<0.000000e+00> : vector<64x128xf32>
    %17 = tpu.matmul %16, %14, %cst_10 {dimension_numbers = #tpu.dot_dimension_numbers<[1], [0], [0], [1], [0, 0, 1, 1], [], []>} : vector<64x64xbf16>, vector<64x128xbf16>, vector<64x128xf32> -> vector<64x128xf32>
    %c0_11 = arith.constant 0 : index
    %c0_12 = arith.constant 0 : index
    %c0_13 = arith.constant 0 : index
    %18 = vector.load %arg5[%c0_11, %c0_12, %c0_13] : memref<2x64x1xf32, #tpu.memory_space<vmem>>, vector<1x64x1xf32>
    %19 = vector.shape_cast %18 : vector<1x64x1xf32> to vector<64x1xf32>
    %20 = vector.broadcast %19 : vector<64x1xf32> to vector<64x128xf32>
    %21 = arith.addf %17, %20 : vector<64x128xf32>
    %cst_14 = arith.constant 0.000000e+00 : f32
    %22 = vector.broadcast %cst_14 : f32 to vector<64x128xf32>
    %23 = arith.subf %22, %21 : vector<64x128xf32>
    %24 = math.exp %23 : vector<64x128xf32>
    %cst_15 = arith.constant 1.000000e+00 : f32
    %25 = vector.broadcast %cst_15 : f32 to vector<64x128xf32>
    %26 = arith.addf %24, %25 : vector<64x128xf32>
    %27 = tpu.reciprocal %26 : vector<64x128xf32> -> vector<64x128xf32>
    %28 = arith.mulf %21, %27 : vector<64x128xf32>
    %29 = arith.truncf %28 : vector<64x128xf32> to vector<64x128xbf16>
    %c1 = arith.constant 1 : index
    %c0_16 = arith.constant 0 : index
    %c0_17 = arith.constant 0 : index
    %30 = vector.load %arg4[%c1, %c0_16, %c0_17] : memref<2x64x64xbf16, #tpu.memory_space<vmem>>, vector<1x64x64xbf16>
    %31 = vector.shape_cast %30 : vector<1x64x64xbf16> to vector<64x64xbf16>
    %cst_18 = arith.constant dense<0.000000e+00> : vector<64x128xf32>
    %32 = tpu.matmul %31, %29, %cst_18 {dimension_numbers = #tpu.dot_dimension_numbers<[1], [0], [0], [1], [0, 0, 1, 1], [], []>} : vector<64x64xbf16>, vector<64x128xbf16>, vector<64x128xf32> -> vector<64x128xf32>
    %c1_19 = arith.constant 1 : index
    %c0_20 = arith.constant 0 : index
    %c0_21 = arith.constant 0 : index
    %33 = vector.load %arg5[%c1_19, %c0_20, %c0_21] : memref<2x64x1xf32, #tpu.memory_space<vmem>>, vector<1x64x1xf32>
    %34 = vector.shape_cast %33 : vector<1x64x1xf32> to vector<64x1xf32>
    %35 = vector.broadcast %34 : vector<64x1xf32> to vector<64x128xf32>
    %36 = arith.addf %32, %35 : vector<64x128xf32>
    %cst_22 = arith.constant 0.000000e+00 : f32
    %37 = vector.broadcast %cst_22 : f32 to vector<64x128xf32>
    %38 = arith.subf %37, %36 : vector<64x128xf32>
    %39 = math.exp %38 : vector<64x128xf32>
    %cst_23 = arith.constant 1.000000e+00 : f32
    %40 = vector.broadcast %cst_23 : f32 to vector<64x128xf32>
    %41 = arith.addf %39, %40 : vector<64x128xf32>
    %42 = tpu.reciprocal %41 : vector<64x128xf32> -> vector<64x128xf32>
    %43 = arith.mulf %36, %42 : vector<64x128xf32>
    %44 = arith.truncf %43 : vector<64x128xf32> to vector<64x128xbf16>
    %c0_24 = arith.constant 0 : index
    %c0_25 = arith.constant 0 : index
    %45 = vector.load %arg6[%c0_24, %c0_25] : memref<8x64xbf16, #tpu.memory_space<vmem>>, vector<8x64xbf16>
    %cst_26 = arith.constant dense<0.000000e+00> : vector<8x128xf32>
    %46 = tpu.matmul %45, %44, %cst_26 {dimension_numbers = #tpu.dot_dimension_numbers<[1], [0], [0], [1], [0, 0, 1, 1], [], []>} : vector<8x64xbf16>, vector<64x128xbf16>, vector<8x128xf32> -> vector<8x128xf32>
    %c0_27 = arith.constant 0 : index
    %c0_28 = arith.constant 0 : index
    %47 = vector.load %arg7[%c0_27, %c0_28] : memref<8x1xf32, #tpu.memory_space<vmem>>, vector<8x1xf32>
    %48 = vector.broadcast %47 : vector<8x1xf32> to vector<8x128xf32>
    %49 = arith.addf %46, %48 : vector<8x128xf32>
    %c0_29 = arith.constant 0 : index
    %c0_30 = arith.constant 0 : index
    %50 = vector.load %arg8[%c0_29, %c0_30] : memref<8x128xf32, #tpu.memory_space<vmem>>, vector<8x128xf32>
    tpu.vector_store %arg8[%c0_29, %c0_30], %49 {strides = array<i32>} : memref<8x128xf32, #tpu.memory_space<vmem>>, vector<8x128xf32>,
    return
  }
  func.func @transform_0(%arg0: i32) -> (i32, i32) {
    %c0_i32 = arith.constant 0 : i32
    %c0_i32_0 = arith.constant 0 : i32
    return %arg0, %c0_i32 : i32, i32
  }
  func.func @transform_1(%arg0: i32) -> (i32, i32) {
    %c0_i32 = arith.constant 0 : i32
    %c0_i32_0 = arith.constant 0 : i32
    %c0_i32_1 = arith.constant 0 : i32
    return %c0_i32, %c0_i32_0 : i32, i32
  }
  func.func @transform_2(%arg0: i32) -> (i32, i32) {
    %c0_i32 = arith.constant 0 : i32
    %c0_i32_0 = arith.constant 0 : i32
    %c0_i32_1 = arith.constant 0 : i32
    return %c0_i32, %c0_i32_0 : i32, i32
  }
  func.func @transform_3(%arg0: i32) -> (i32, i32, i32) {
    %c0_i32 = arith.constant 0 : i32
    %c0_i32_0 = arith.constant 0 : i32
    %c0_i32_1 = arith.constant 0 : i32
    %c0_i32_2 = arith.constant 0 : i32
    return %c0_i32, %c0_i32_0, %c0_i32_1 : i32, i32, i32
  }
  func.func @transform_4(%arg0: i32) -> (i32, i32, i32) {
    %c0_i32 = arith.constant 0 : i32
    %c0_i32_0 = arith.constant 0 : i32
    %c0_i32_1 = arith.constant 0 : i32
    %c0_i32_2 = arith.constant 0 : i32
    return %c0_i32, %c0_i32_0, %c0_i32_1 : i32, i32, i32
  }
  func.func @transform_5(%arg0: i32) -> (i32, i32) {
    %c0_i32 = arith.constant 0 : i32
    %c0_i32_0 = arith.constant 0 : i32
    %c0_i32_1 = arith.constant 0 : i32
    return %c0_i32, %c0_i32_0 : i32, i32
  }
  func.func @transform_6(%arg0: i32) -> (i32, i32) {
    %c0_i32 = arith.constant 0 : i32
    %c0_i32_0 = arith.constant 0 : i32
    %c0_i32_1 = arith.constant 0 : i32
    return %c0_i32, %c0_i32_0 : i32, i32
  }
  func.func @transform_7(%arg0: i32) -> (i32, i32) {
    %c0_i32 = arith.constant 0 : i32
    %c0_i32_0 = arith.constant 0 : i32
    return %c0_i32, %arg0 : i32, i32
  }
}

</mosaic_0001>

<llo_original>
// kernel: tpu_custom_call.1
$region0: #{tpu_custom_call.1}
  #allocation0 [shape = 'u32[]', space=smem, size = 0x4, offset = 0x4, fixed_abs, tag = 'smem constant byte address 0x4 - core index']
  #allocation1 [shape = 'u32[72,128]{1,0:T(1,128)}', space=vmem, size = 0x9000, scoped, tag = 'internal scratch']
  %s0 = inlined_call_operand.vmem [shape: f32[256,120], index: 0, kind: input, shape index: {}]
  %s1 = inlined_call_operand.vmem [shape: bf16[64,120], index: 1, kind: input, shape index: {}]
  %s2 = inlined_call_operand.vmem [shape: f32[64,1], index: 2, kind: input, shape index: {}]
  %s3 = inlined_call_operand.vmem [shape: bf16[2,64,64], index: 3, kind: input, shape index: {}]
  %s4 = inlined_call_operand.vmem [shape: f32[2,64,1], index: 4, kind: input, shape index: {}]
  %s5 = inlined_call_operand.vmem [shape: bf16[8,64], index: 5, kind: input, shape index: {}]
  %s6 = inlined_call_operand.vmem [shape: f32[8,1], index: 6, kind: input, shape index: {}]
  %s7 = inlined_call_operand.hbm [shape: f32[8,256], index: 7, kind: output, shape index: {}]
  %s8 = sld [smem:[#allocation0]]
  $region61: #{tpu_custom_call.1} parent=0
    _
  %s10 = ssub.s32 1, %s8
  %s11 = scalar_select 0, %s10, %s8
  $region1: #{tpu_custom_call.1} parent=0
    #allocation2 [shape = 'u8[8192]{0}', space=vmem, size = 0x2000, scoped, tag = 'output window, operand 0']
    #allocation3 [shape = 's32[2]{0}', space=sflag, size = 0x8, scoped, tag = 'scoped memory for tpu_custom_call.1']
    %12 = vsyncpa [#allocation3], 0
    %s13 = scalar_lea.sflag [#allocation3], 1
    %14 = vsyncpa %s13, 0
    loop: start=0, step=1, limit=4
    $region2: #{tpu_custom_call.1} parent=1 // loop_pre_header
      _
    $region3: #{tpu_custom_call.1} parent=1 // loop_header
      %s16 = sphi 0, %s20
      %p17 = scmp.ge.s32.totalorder %s16, 4
      %s26 = sphi 0, %s28
      %s29 = sphi 0, %s26
      %s30 = sphi 0, %s29
      %s46 = sphi 0, %s30
      %s50 = sphi 0, %s50
      %s52 = sphi 0, %s50
      %s53 = sphi 0, %s52
      %s67 = sphi 0, %s53
      %s71 = sphi 0, %s71
      %s73 = sphi 0, %s71
      %s74 = sphi 0, %s73
      %s88 = sphi 0, %s74
      %s92 = sphi 0, %s92
      %s94 = sphi 0, %s92
      %s95 = sphi 0, %s94
      %s109 = sphi 0, %s95
      %s113 = sphi 0, %s113
      %s115 = sphi 0, %s113
      %s116 = sphi 0, %s115
      %s130 = sphi 0, %s116
      %s134 = sphi 0, %s134
      %s136 = sphi 0, %s134
      %s137 = sphi 0, %s136
      %s151 = sphi 0, %s137
      %s155 = sphi 0, %s155
      %s157 = sphi 0, %s155
      %s158 = sphi 0, %s157
      %s172 = sphi 0, %s158
      %s178 = sphi 0, %s180
      %s181 = sphi 0, %s178
      %s182 = sphi 0, %s181
      %s198 = sphi 0, %s182
    $region4: #{tpu_custom_call.1} parent=1 // loop_header_branch
      %19 = sbr.rel (%p17) target = $region8
    $region5: #{tpu_custom_call.1} parent=1 // loop_body
      %s21 = ssub.s32 %s16, 1
      %s22 = ssub.s32 %s16, 2
      %s23 = sadd.s32 %s16, 1
      %s24 = ssub.s32 %s16, %s23
      %p25 = scmp.eq.s32.totalorder %s24, 0
      %s27 = sadd.s32 %s26, 1
      %s28 = scalar_select %p25, %s26, %s27
      %p31 = pneg %p25
      %p32 = scmp.eq.s32.totalorder %s16, 1
      %p33 = por %p31, %p32
      %p34 = scmp.ne.s32.totalorder %s26, %s29
      %p35 = scmp.eq.s32.totalorder %s16, 0
      %p36 = por %p34, %p35
      %p37 = scmp.ne.s32.totalorder %s26, %s29
      %p38 = scmp.eq.s32.totalorder %s21, 1
      %p39 = por %p37, %p38
      %p40 = scmp.ne.s32.totalorder %s29, %s30
      %p41 = scmp.eq.s32.totalorder %s21, 0
      %p42 = por %p40, %p41
      %p43 = scmp.ne.s32.totalorder %s29, %s30
      %p44 = scmp.eq.s32.totalorder %s22, 1
      %p45 = por %p43, %p44
      %p47 = scmp.ne.s32.totalorder %s30, %s46
      %p48 = scmp.eq.s32.totalorder %s22, 0
      %p49 = por %p47, %p48
      %s51 = sadd.s32 %s50, 1
      %p54 = scmp.eq.s32.totalorder %s16, 1
      %p55 = scmp.ne.s32.totalorder %s50, %s52
      %p56 = scmp.eq.s32.totalorder %s16, 0
      %p57 = por %p55, %p56
      %p58 = scmp.ne.s32.totalorder %s50, %s52
      %p59 = scmp.eq.s32.totalorder %s21, 1
      %p60 = por %p58, %p59
      %p61 = scmp.ne.s32.totalorder %s52, %s53
      %p62 = scmp.eq.s32.totalorder %s21, 0
      %p63 = por %p61, %p62
      %p64 = scmp.ne.s32.totalorder %s52, %s53
      %p65 = scmp.eq.s32.totalorder %s22, 1
      %p66 = por %p64, %p65
      %p68 = scmp.ne.s32.totalorder %s53, %s67
      %p69 = scmp.eq.s32.totalorder %s22, 0
      %p70 = por %p68, %p69
      %s72 = sadd.s32 %s71, 1
      %p75 = scmp.eq.s32.totalorder %s16, 1
      %p76 = scmp.ne.s32.totalorder %s71, %s73
      %p77 = scmp.eq.s32.totalorder %s16, 0
      %p78 = por %p76, %p77
      %p79 = scmp.ne.s32.totalorder %s71, %s73
      %p80 = scmp.eq.s32.totalorder %s21, 1
      %p81 = por %p79, %p80
      %p82 = scmp.ne.s32.totalorder %s73, %s74
      %p83 = scmp.eq.s32.totalorder %s21, 0
      %p84 = por %p82, %p83
      %p85 = scmp.ne.s32.totalorder %s73, %s74
      %p86 = scmp.eq.s32.totalorder %s22, 1
      %p87 = por %p85, %p86
      %p89 = scmp.ne.s32.totalorder %s74, %s88
      %p90 = scmp.eq.s32.totalorder %s22, 0
      %p91 = por %p89, %p90
      %s93 = sadd.s32 %s92, 1
      %p96 = scmp.eq.s32.totalorder %s16, 1
      %p97 = scmp.ne.s32.totalorder %s92, %s94
      %p98 = scmp.eq.s32.totalorder %s16, 0
      %p99 = por %p97, %p98
      %p100 = scmp.ne.s32.totalorder %s92, %s94
      %p101 = scmp.eq.s32.totalorder %s21, 1
      %p102 = por %p100, %p101
      %p103 = scmp.ne.s32.totalorder %s94, %s95
      %p104 = scmp.eq.s32.totalorder %s21, 0
      %p105 = por %p103, %p104
      %p106 = scmp.ne.s32.totalorder %s94, %s95
      %p107 = scmp.eq.s32.totalorder %s22, 1
      %p108 = por %p106, %p107
      %p110 = scmp.ne.s32.totalorder %s95, %s109
      %p111 = scmp.eq.s32.totalorder %s22, 0
      %p112 = por %p110, %p111
      %s114 = sadd.s32 %s113, 1
      %p117 = scmp.eq.s32.totalorder %s16, 1
      %p118 = scmp.ne.s32.totalorder %s113, %s115
      %p119 = scmp.eq.s32.totalorder %s16, 0
      %p120 = por %p118, %p119
      %p121 = scmp.ne.s32.totalorder %s113, %s115
      %p122 = scmp.eq.s32.totalorder %s21, 1
      %p123 = por %p121, %p122
      %p124 = scmp.ne.s32.totalorder %s115, %s116
      %p125 = scmp.eq.s32.totalorder %s21, 0
      %p126 = por %p124, %p125
      %p127 = scmp.ne.s32.totalorder %s115, %s116
      %p128 = scmp.eq.s32.totalorder %s22, 1
      %p129 = por %p127, %p128
      %p131 = scmp.ne.s32.totalorder %s116, %s130
      %p132 = scmp.eq.s32.totalorder %s22, 0
      %p133 = por %p131, %p132
      %s135 = sadd.s32 %s134, 1
      %p138 = scmp.eq.s32.totalorder %s16, 1
      %p139 = scmp.ne.s32.totalorder %s134, %s136
      %p140 = scmp.eq.s32.totalorder %s16, 0
      %p141 = por %p139, %p140
      %p142 = scmp.ne.s32.totalorder %s134, %s136
      %p143 = scmp.eq.s32.totalorder %s21, 1
      %p144 = por %p142, %p143
      %p145 = scmp.ne.s32.totalorder %s136, %s137
      %p146 = scmp.eq.s32.totalorder %s21, 0
      %p147 = por %p145, %p146
      %p148 = scmp.ne.s32.totalorder %s136, %s137
      %p149 = scmp.eq.s32.totalorder %s22, 1
      %p150 = por %p148, %p149
      %p152 = scmp.ne.s32.totalorder %s137, %s151
      %p153 = scmp.eq.s32.totalorder %s22, 0
      %p154 = por %p152, %p153
      %s156 = sadd.s32 %s155, 1
      %p159 = scmp.eq.s32.totalorder %s16, 1
      %p160 = scmp.ne.s32.totalorder %s155, %s157
      %p161 = scmp.eq.s32.totalorder %s16, 0
      %p162 = por %p160, %p161
      %p163 = scmp.ne.s32.totalorder %s155, %s157
      %p164 = scmp.eq.s32.totalorder %s21, 1
      %p165 = por %p163, %p164
      %p166 = scmp.ne.s32.totalorder %s157, %s158
      %p167 = scmp.eq.s32.totalorder %s21, 0
      %p168 = por %p166, %p167
      %p169 = scmp.ne.s32.totalorder %s157, %s158
      %p170 = scmp.eq.s32.totalorder %s22, 1
      %p171 = por %p169, %p170
      %p173 = scmp.ne.s32.totalorder %s158, %s172
      %p174 = scmp.eq.s32.totalorder %s22, 0
      %p175 = por %p173, %p174
      %s176 = ssub.s32 %s16, %s23
      %p177 = scmp.eq.s32.totalorder %s176, 0
      %s179 = sadd.s32 %s178, 1
      %s180 = scalar_select %p177, %s178, %s179
      %p183 = pneg %p177
      %p184 = scmp.eq.s32.totalorder %s16, 1
      %p185 = por %p183, %p184
      %p186 = scmp.ne.s32.totalorder %s178, %s181
      %p187 = scmp.eq.s32.totalorder %s16, 0
      %p188 = por %p186, %p187
      %p189 = scmp.ne.s32.totalorder %s178, %s181
      %p190 = scmp.eq.s32.totalorder %s21, 1
      %p191 = por %p189, %p190
      %p192 = scmp.ne.s32.totalorder %s181, %s182
      %p193 = scmp.eq.s32.totalorder %s21, 0
      %p194 = por %p192, %p193
      %p195 = scmp.ne.s32.totalorder %s181, %s182
      %p196 = scmp.eq.s32.totalorder %s22, 1
      %p197 = por %p195, %p196
      %p199 = scmp.ne.s32.totalorder %s182, %s198
      %p200 = scmp.eq.s32.totalorder %s22, 0
      %p201 = por %p199, %p200
      %p202 = scmp.le.s32.totalorder 1, %s16
      %p203 = scmp.lt.s32.totalorder %s16, 3
      %p204 = pnand %p202, %p203
      %p205 = pneg %p204
      // Predicated region
      $region9: #{tpu_custom_call.1} parent=5 // pred_check
        _
      $region10: #{tpu_custom_call.1} parent=5 // pred_check_branch
        %207 = sbr.rel (%p204) target = $region12
      $region11: #{tpu_custom_call.1} parent=5 // pred_region
        %s208 = ssub.s32 %s16, 1
        // Predicated region
        $region13: #{tpu_custom_call.1} parent=11 // pred_check
          %p209 = pneg %p63
        $region14: #{tpu_custom_call.1} parent=11 // pred_check_branch
          %211 = sbr.rel (%p209) target = $region16
        $region15: #{tpu_custom_call.1} parent=11 // pred_region
          _
        $region16: #{tpu_custom_call.1} parent=11 // pred_fallthru
          _
        // Predicated region
        $region17: #{tpu_custom_call.1} parent=11 // pred_check
          %p212 = pneg %p84
        $region18: #{tpu_custom_call.1} parent=11 // pred_check_branch
          %214 = sbr.rel (%p212) target = $region20
        $region19: #{tpu_custom_call.1} parent=11 // pred_region
          _
        $region20: #{tpu_custom_call.1} parent=11 // pred_fallthru
          _
        // Predicated region
        $region21: #{tpu_custom_call.1} parent=11 // pred_check
          %p215 = pneg %p105
        $region22: #{tpu_custom_call.1} parent=11 // pred_check_branch
          %217 = sbr.rel (%p215) target = $region24
        $region23: #{tpu_custom_call.1} parent=11 // pred_region
          _
        $region24: #{tpu_custom_call.1} parent=11 // pred_fallthru
          _
        // Predicated region
        $region25: #{tpu_custom_call.1} parent=11 // pred_check
          %p218 = pneg %p126
        $region26: #{tpu_custom_call.1} parent=11 // pred_check_branch
          %220 = sbr.rel (%p218) target = $region28
        $region27: #{tpu_custom_call.1} parent=11 // pred_region
          _
        $region28: #{tpu_custom_call.1} parent=11 // pred_fallthru
          _
        // Predicated region
        $region29: #{tpu_custom_call.1} parent=11 // pred_check
          %p221 = pneg %p147
        $region30: #{tpu_custom_call.1} parent=11 // pred_check_branch
          %223 = sbr.rel (%p221) target = $region32
        $region31: #{tpu_custom_call.1} parent=11 // pred_region
          _
        $region32: #{tpu_custom_call.1} parent=11 // pred_fallthru
          _
        // Predicated region
        $region33: #{tpu_custom_call.1} parent=11 // pred_check
          %p224 = pneg %p168
        $region34: #{tpu_custom_call.1} parent=11 // pred_check_branch
          %226 = sbr.rel (%p224) target = $region36
        $region35: #{tpu_custom_call.1} parent=11 // pred_region
          _
        $region36: #{tpu_custom_call.1} parent=11 // pred_fallthru
          _
      $region12: #{tpu_custom_call.1} parent=5 // pred_fallthru
        _
      %p227 = scmp.lt.s32.totalorder %s16, 2
      // Predicated region
      $region37: #{tpu_custom_call.1} parent=5 // pred_check
        %p228 = pneg %p227
      $region38: #{tpu_custom_call.1} parent=5 // pred_check_branch
        %230 = sbr.rel (%p228) target = $region40
      $region39: #{tpu_custom_call.1} parent=5 // pred_region
        // Predicated region
        $region41: #{tpu_custom_call.1} parent=39 // pred_check
          %p231 = pneg %p36
        $region42: #{tpu_custom_call.1} parent=39 // pred_check_branch
          %233 = sbr.rel (%p231) target = $region44
        $region43: #{tpu_custom_call.1} parent=39 // pred_region
          %s234 = smul.u32 16, %s16
          %p235 = scmp.lt.s32.totalorder %s234, 31
          %s236 = scalar_select %p235, %s234, 31
          %s237 = smul.addr %s236, 8
          %s238 = scalar_lea.vmem %s0, %s237
          %s239 = smul.u32 16, %s16
        $region44: #{tpu_custom_call.1} parent=39 // pred_fallthru
          _
      $region40: #{tpu_custom_call.1} parent=5 // pred_fallthru
        _
      %p240 = scmp.le.s32.totalorder 1, %s16
      %p241 = scmp.lt.s32.totalorder %s16, 3
      %p242 = pnand %p240, %p241
      %p243 = pneg %p242
      // Predicated region
      $region45: #{tpu_custom_call.1} parent=5 // pred_check
        _
      $region46: #{tpu_custom_call.1} parent=5 // pred_check_branch
        %245 = sbr.rel (%p242) target = $region48
      $region47: #{tpu_custom_call.1} parent=5 // pred_region
        %s246 = ssub.s32 %s16, 1
        %s247 = smul.u32 16, %s21
        %p248 = scmp.lt.s32.totalorder %s247, 31
        %s249 = scalar_select %p248, %s247, 31
        %s250 = smul.addr %s249, 8
        %s251 = scalar_lea.vmem %s0, %s250
        %p252 = pneg %p42
        %p253 = pneg %p39
        %p254 = pneg %p63
        %p255 = pneg %p60
        %p256 = pneg %p84
        %p257 = pneg %p81
        %p258 = pneg %p105
        %p259 = pneg %p102
        %p260 = pneg %p126
        %p261 = pneg %p123
        %p262 = pneg %p147
        %p263 = pneg %p144
        %p264 = pneg %p168
        %p265 = pneg %p165
        %p266 = pneg %p194
        %p267 = pneg %p191
        %s268 = sand.u32 %s181, 1
        %s269 = scalar_lea.sflag [#allocation3], %s268
        %s270 = sand.u32 %s181, 1
        %s271 = smul.addr %s270, 8
        %s272 = scalar_lea.vmem [#allocation2], %s271
        %s273 = smul.u32 16, %s21
        %p274 = scmp.lt.s32.totalorder %s273, 31
        %s275 = scalar_select %p274, %s273, 31
        %s276 = smul.addr %s275, 8
        %s277 = scalar_lea.vmem %s0, %s276
        %s278 = smul.u32 16, %s21
        %v280 = vld [vmem:[%s277] sm:$0xff]
        %v281 = vld [vmem:[%s277 + $0x8] sm:$0xff]
        %v282 = vld [vmem:[%s277 + $0x10] sm:$0xff]
        %v283 = vld [vmem:[%s277 + $0x18] sm:$0xff]
        %v284 = vld [vmem:[%s277 + $0x20] sm:$0xff]
        %v285 = vld [vmem:[%s277 + $0x28] sm:$0xff]
        %v286 = vld [vmem:[%s277 + $0x30] sm:$0xff]
        %v287 = vld [vmem:[%s277 + $0x38] sm:$0xff]
        %v288 = vld [vmem:[%s277 + $0x40] sm:$0xff]
        %v289 = vld [vmem:[%s277 + $0x48] sm:$0xff]
        %v290 = vld [vmem:[%s277 + $0x50] sm:$0xff]
        %v291 = vld [vmem:[%s277 + $0x58] sm:$0xff]
        %v292 = vld [vmem:[%s277 + $0x60] sm:$0xff]
        %v293 = vld [vmem:[%s277 + $0x68] sm:$0xff]
        %v294 = vld [vmem:[%s277 + $0x70] sm:$0xff]
        %v295 = vld [vmem:[%s277 + $0x78] sm:$0xff]
        %v296 = vpack.c.bf16 %v281, %v280
        %v297 = vpack.c.bf16 %v283, %v282
        %v298 = vpack.c.bf16 %v285, %v284
        %v299 = vpack.c.bf16 %v287, %v286
        %v300 = vpack.c.bf16 %v289, %v288
        %v301 = vpack.c.bf16 %v291, %v290
        %v302 = vpack.c.bf16 %v293, %v292
        %v303 = vpack.c.bf16 %v295, %v294
        %v304 = vld [vmem:[%s1] sm:$0xf]
        %v305 = vld [vmem:[%s1 + $0x4] sm:$0xf]
        %v306 = vld [vmem:[%s1 + $0x8] sm:$0xf]
        %v307 = vld [vmem:[%s1 + $0xc] sm:$0xf]
        %v308 = vld [vmem:[%s1 + $0x10] sm:$0xf]
        %v309 = vld [vmem:[%s1 + $0x14] sm:$0xf]
        %v310 = vld [vmem:[%s1 + $0x18] sm:$0xf]
        %v311 = vld [vmem:[%s1 + $0x1c] sm:$0xf]
        %v312 = vld [vmem:[%s2] sm:$0xff]
        %v313 = vld [vmem:[%s2 + $0x8] sm:$0xff]
        %v314 = vld [vmem:[%s2 + $0x10] sm:$0xff]
        %v315 = vld [vmem:[%s2 + $0x18] sm:$0xff]
        %v316 = vld [vmem:[%s2 + $0x20] sm:$0xff]
        %v317 = vld [vmem:[%s2 + $0x28] sm:$0xff]
        %v318 = vld [vmem:[%s2 + $0x30] sm:$0xff]
        %v319 = vld [vmem:[%s2 + $0x38] sm:$0xff]
        %321 = vset.pattern.permute.xlu0 0
        %322 = vperm.xlu0 %321, %v312
        %v323 = vpop.permute.xlu0 %322
        %326 = vset.pattern.permute.xlu0 0
        %327 = vperm.xlu0 %326, %v313
        %v328 = vpop.permute.xlu0 %327
        %331 = vset.pattern.permute.xlu0 0
        %332 = vperm.xlu0 %331, %v314
        %v333 = vpop.permute.xlu0 %332
        %336 = vset.pattern.permute.xlu0 0
        %337 = vperm.xlu0 %336, %v315
        %v338 = vpop.permute.xlu0 %337
        %341 = vset.pattern.permute.xlu0 0
        %342 = vperm.xlu0 %341, %v316
        %v343 = vpop.permute.xlu0 %342
        %346 = vset.pattern.permute.xlu0 0
        %347 = vperm.xlu0 %346, %v317
        %v348 = vpop.permute.xlu0 %347
        %351 = vset.pattern.permute.xlu0 0
        %352 = vperm.xlu0 %351, %v318
        %v353 = vpop.permute.xlu0 %352
        %356 = vset.pattern.permute.xlu0 0
        %357 = vperm.xlu0 %356, %v319
        %v358 = vpop.permute.xlu0 %357
        %v368 = vunpack.c.l.b16 %v304
        %v369 = vunpack.c.l.b16 %v305
        %v370 = vunpack.c.l.b16 %v306
        %v371 = vunpack.c.l.b16 %v307
        %v372 = vunpack.c.l.b16 %v308
        %v373 = vunpack.c.l.b16 %v309
        %v374 = vunpack.c.l.b16 %v310
        %v375 = vunpack.c.l.b16 %v311
        %v376 = vpack.c.b16 %v369, %v368
        %v377 = vpack.c.b16 %v371, %v370
        %v378 = vpack.c.b16 %v373, %v372
        %v379 = vpack.c.b16 %v375, %v374
        %vm380 = vcmask 982016
        %v382 = vsel %vm380, %v376, 0
        %v385 = vsel %vm380, %v377, 0
        %v388 = vsel %vm380, %v378, 0
        %v391 = vsel %vm380, %v379, 0
        %v394 = vsel %vm380, %v296, 0
        %v397 = vsel %vm380, %v297, 0
        %v400 = vsel %vm380, %v298, 0
        %v403 = vsel %vm380, %v299, 0
        %v406 = vsel %vm380, %v300, 0
        %v409 = vsel %vm380, %v301, 0
        %v412 = vsel %vm380, %v302, 0
        %v415 = vsel %vm380, %v303, 0
        %417 = vmatpush.bf16.xpose.msra.mxu0 %v415
        %418 = vmatpush.bf16.xpose.msra.mxu0 %v412
        %419 = vmatpush.bf16.xpose.msra.mxu0 %v409
        %420 = vmatpush.bf16.xpose.msra.mxu0 %v406
        %421 = vmatpush.bf16.xpose.msra.mxu0 %v403
        %422 = vmatpush.bf16.xpose.msra.mxu0 %v400
        %423 = vmatpush.bf16.xpose.msra.mxu0 %v397
        %424 = vmatpush.bf16.xpose.msra.mxu0 %v394
        %425 = vmatmul.bf16.gmra.mxu0 %v382
        %v426 = vpop.f32.mrf.mxu0
        %v427 = vadd.f32 %v323, %v426
        %v428 = vpop.f32.mrf.mxu0
        %v429 = vadd.f32 %v328, %v428
        %430 = vmatmul.bf16.gmra.mxu0 %v385
        %v431 = vpop.f32.mrf.mxu0
        %v432 = vadd.f32 %v333, %v431
        %v433 = vpop.f32.mrf.mxu0
        %v434 = vadd.f32 %v338, %v433
        %435 = vmatmul.bf16.gmra.mxu0 %v388
        %v436 = vpop.f32.mrf.mxu0
        %v437 = vadd.f32 %v343, %v436
        %v438 = vpop.f32.mrf.mxu0
        %v439 = vadd.f32 %v348, %v438
        %440 = vmatmul.bf16.gmra.mxu0 %v391
        %v441 = vpop.f32.mrf.mxu0
        %v442 = vadd.f32 %v353, %v441
        %v443 = vpop.f32.mrf.mxu0
        %v444 = vadd.f32 %v358, %v443
        %445 = vdwg.mxu0
        %v446 = vsub.f32 0.0, %v427
        %v447 = vsub.f32 0.0, %v429
        %v448 = vsub.f32 0.0, %v432
        %v449 = vsub.f32 0.0, %v434
        %v450 = vsub.f32 0.0, %v437
        %v451 = vsub.f32 0.0, %v439
        %v452 = vsub.f32 0.0, %v442
        %v453 = vsub.f32 0.0, %v444
        %v454 = vmul.f32 %v446, 1.442695
        %v455 = vpow.pop %v454
        %v456 = vmul.f32 %v447, 1.442695
        %v457 = vpow.pop %v456
        %v458 = vmul.f32 %v448, 1.442695
        %v459 = vpow.pop %v458
        %v460 = vmul.f32 %v449, 1.442695
        %v461 = vpow.pop %v460
        %v462 = vmul.f32 %v450, 1.442695
        %v463 = vpow.pop %v462
        %v464 = vmul.f32 %v451, 1.442695
        %v465 = vpow.pop %v464
        %v466 = vmul.f32 %v452, 1.442695
        %v467 = vpow.pop %v466
        %v468 = vmul.f32 %v453, 1.442695
        %v469 = vpow.pop %v468
        %v470 = vadd.f32 %v455, 1.0
        %v471 = vadd.f32 %v457, 1.0
        %v472 = vadd.f32 %v459, 1.0
        %v473 = vadd.f32 %v461, 1.0
        %v474 = vadd.f32 %v463, 1.0
        %v475 = vadd.f32 %v465, 1.0
        %v476 = vadd.f32 %v467, 1.0
        %v477 = vadd.f32 %v469, 1.0
        %v478 = vrcp.pop %v470
        %v479 = vmul.f32 %v470, %v478
        %v480 = vsub.f32 1.0, %v479
        %v481 = vmul.f32 %v478, %v480
        %v482 = vadd.f32 %v478, %v481
        %vm483 = vweird.f32 %v470
        %vm484 = vweird.f32 %v478
        %vm485 = vmor %vm483, %vm484
        %v486 = vsel %vm485, %v478, %v482
        %v487 = vand.u32 2147483647, %v470
        %vm488 = vcmp.eq.f32.partialorder %v487, 8.507059e+37
        %v489 = vand.u32 %v470, 2147483648
        %v490 = vor.u32 1.1754944e-38, %v489
        %v491 = vsel %vm488, %v490, %v486
        %v492 = vrcp.pop %v471
        %v493 = vmul.f32 %v471, %v492
        %v494 = vsub.f32 1.0, %v493
        %v495 = vmul.f32 %v492, %v494
        %v496 = vadd.f32 %v492, %v495
        %vm497 = vweird.f32 %v471
        %vm498 = vweird.f32 %v492
        %vm499 = vmor %vm497, %vm498
        %v500 = vsel %vm499, %v492, %v496
        %v501 = vand.u32 2147483647, %v471
        %vm502 = vcmp.eq.f32.partialorder %v501, 8.507059e+37
        %v503 = vand.u32 %v471, 2147483648
        %v504 = vor.u32 1.1754944e-38, %v503
        %v505 = vsel %vm502, %v504, %v500
        %v506 = vrcp.pop %v472
        %v507 = vmul.f32 %v472, %v506
        %v508 = vsub.f32 1.0, %v507
        %v509 = vmul.f32 %v506, %v508
        %v510 = vadd.f32 %v506, %v509
        %vm511 = vweird.f32 %v472
        %vm512 = vweird.f32 %v506
        %vm513 = vmor %vm511, %vm512
        %v514 = vsel %vm513, %v506, %v510
        %v515 = vand.u32 2147483647, %v472
        %vm516 = vcmp.eq.f32.partialorder %v515, 8.507059e+37
        %v517 = vand.u32 %v472, 2147483648
        %v518 = vor.u32 1.1754944e-38, %v517
        %v519 = vsel %vm516, %v518, %v514
        %v520 = vrcp.pop %v473
        %v521 = vmul.f32 %v473, %v520
        %v522 = vsub.f32 1.0, %v521
        %v523 = vmul.f32 %v520, %v522
        %v524 = vadd.f32 %v520, %v523
        %vm525 = vweird.f32 %v473
        %vm526 = vweird.f32 %v520
        %vm527 = vmor %vm525, %vm526
        %v528 = vsel %vm527, %v520, %v524
        %v529 = vand.u32 2147483647, %v473
        %vm530 = vcmp.eq.f32.partialorder %v529, 8.507059e+37
        %v531 = vand.u32 %v473, 2147483648
        %v532 = vor.u32 1.1754944e-38, %v531
        %v533 = vsel %vm530, %v532, %v528
        %v534 = vrcp.pop %v474
        %v535 = vmul.f32 %v474, %v534
        %v536 = vsub.f32 1.0, %v535
        %v537 = vmul.f32 %v534, %v536
        %v538 = vadd.f32 %v534, %v537
        %vm539 = vweird.f32 %v474
        %vm540 = vweird.f32 %v534
        %vm541 = vmor %vm539, %vm540
        %v542 = vsel %vm541, %v534, %v538
        %v543 = vand.u32 2147483647, %v474
        %vm544 = vcmp.eq.f32.partialorder %v543, 8.507059e+37
        %v545 = vand.u32 %v474, 2147483648
        %v546 = vor.u32 1.1754944e-38, %v545
        %v547 = vsel %vm544, %v546, %v542
        %v548 = vrcp.pop %v475
        %v549 = vmul.f32 %v475, %v548
        %v550 = vsub.f32 1.0, %v549
        %v551 = vmul.f32 %v548, %v550
        %v552 = vadd.f32 %v548, %v551
        %vm553 = vweird.f32 %v475
        %vm554 = vweird.f32 %v548
        %vm555 = vmor %vm553, %vm554
        %v556 = vsel %vm555, %v548, %v552
        %v557 = vand.u32 2147483647, %v475
        %vm558 = vcmp.eq.f32.partialorder %v557, 8.507059e+37
        %v559 = vand.u32 %v475, 2147483648
        %v560 = vor.u32 1.1754944e-38, %v559
        %v561 = vsel %vm558, %v560, %v556
        %v562 = vrcp.pop %v476
        %v563 = vmul.f32 %v476, %v562
        %v564 = vsub.f32 1.0, %v563
        %v565 = vmul.f32 %v562, %v564
        %v566 = vadd.f32 %v562, %v565
        %vm567 = vweird.f32 %v476
        %vm568 = vweird.f32 %v562
        %vm569 = vmor %vm567, %vm568
        %v570 = vsel %vm569, %v562, %v566
        %v571 = vand.u32 2147483647, %v476
        %vm572 = vcmp.eq.f32.partialorder %v571, 8.507059e+37
        %v573 = vand.u32 %v476, 2147483648
        %v574 = vor.u32 1.1754944e-38, %v573
        %v575 = vsel %vm572, %v574, %v570
        %v576 = vrcp.pop %v477
        %v577 = vmul.f32 %v477, %v576
        %v578 = vsub.f32 1.0, %v577
        %v579 = vmul.f32 %v576, %v578
        %v580 = vadd.f32 %v576, %v579
        %vm581 = vweird.f32 %v477
        %vm582 = vweird.f32 %v576
        %vm583 = vmor %vm581, %vm582
        %v584 = vsel %vm583, %v576, %v580
        %v585 = vand.u32 2147483647, %v477
        %vm586 = vcmp.eq.f32.partialorder %v585, 8.507059e+37
        %v587 = vand.u32 %v477, 2147483648
        %v588 = vor.u32 1.1754944e-38, %v587
        %v589 = vsel %vm586, %v588, %v584
        %v590 = vmul.f32 %v427, %v491
        %v591 = vmul.f32 %v429, %v505
        %v592 = vmul.f32 %v432, %v519
        %v593 = vmul.f32 %v434, %v533
        %v594 = vmul.f32 %v437, %v547
        %v595 = vmul.f32 %v439, %v561
        %v596 = vmul.f32 %v442, %v575
        %v597 = vmul.f32 %v444, %v589
        %v598 = vpack.c.bf16 %v591, %v590
        %v599 = vpack.c.bf16 %v593, %v592
        %v600 = vpack.c.bf16 %v595, %v594
        %v601 = vpack.c.bf16 %v597, %v596
        %v602 = vld [vmem:[%s3] sm:$0xf]
        %v603 = vld [vmem:[%s3 + $0x4] sm:$0xf]
        %v604 = vld [vmem:[%s3 + $0x8] sm:$0xf]
        %v605 = vld [vmem:[%s3 + $0xc] sm:$0xf]
        %v606 = vld [vmem:[%s3 + $0x10] sm:$0xf]
        %v607 = vld [vmem:[%s3 + $0x14] sm:$0xf]
        %v608 = vld [vmem:[%s3 + $0x18] sm:$0xf]
        %v609 = vld [vmem:[%s3 + $0x1c] sm:$0xf]
        %v610 = vld [vmem:[%s4] sm:$0xff]
        %v611 = vld [vmem:[%s4 + $0x8] sm:$0xff]
        %v612 = vld [vmem:[%s4 + $0x10] sm:$0xff]
        %v613 = vld [vmem:[%s4 + $0x18] sm:$0xff]
        %v614 = vld [vmem:[%s4 + $0x20] sm:$0xff]
        %v615 = vld [vmem:[%s4 + $0x28] sm:$0xff]
        %v616 = vld [vmem:[%s4 + $0x30] sm:$0xff]
        %v617 = vld [vmem:[%s4 + $0x38] sm:$0xff]
        %619 = vset.pattern.permute.xlu0 0
        %620 = vperm.xlu0 %619, %v610
        %v621 = vpop.permute.xlu0 %620
        %624 = vset.pattern.permute.xlu0 0
        %625 = vperm.xlu0 %624, %v611
        %v626 = vpop.permute.xlu0 %625
        %629 = vset.pattern.permute.xlu0 0
        %630 = vperm.xlu0 %629, %v612
        %v631 = vpop.permute.xlu0 %630
        %634 = vset.pattern.permute.xlu0 0
        %635 = vperm.xlu0 %634, %v613
        %v636 = vpop.permute.xlu0 %635
        %639 = vset.pattern.permute.xlu0 0
        %640 = vperm.xlu0 %639, %v614
        %v641 = vpop.permute.xlu0 %640
        %644 = vset.pattern.permute.xlu0 0
        %645 = vperm.xlu0 %644, %v615
        %v646 = vpop.permute.xlu0 %645
        %649 = vset.pattern.permute.xlu0 0
        %650 = vperm.xlu0 %649, %v616
        %v651 = vpop.permute.xlu0 %650
        %654 = vset.pattern.permute.xlu0 0
        %655 = vperm.xlu0 %654, %v617
        %v656 = vpop.permute.xlu0 %655
        %v666 = vunpack.c.l.b16 %v602
        %v667 = vunpack.c.l.b16 %v603
        %v668 = vunpack.c.l.b16 %v604
        %v669 = vunpack.c.l.b16 %v605
        %v670 = vunpack.c.l.b16 %v606
        %v671 = vunpack.c.l.b16 %v607
        %v672 = vunpack.c.l.b16 %v608
        %v673 = vunpack.c.l.b16 %v609
        %v674 = vpack.c.b16 %v667, %v666
        %v675 = vpack.c.b16 %v669, %v668
        %v676 = vpack.c.b16 %v671, %v670
        %v677 = vpack.c.b16 %v673, %v672
        %vm678 = vcmask 523264
        %v680 = vsel %vm678, %v674, 0
        %v683 = vsel %vm678, %v675, 0
        %v686 = vsel %vm678, %v676, 0
        %v689 = vsel %vm678, %v677, 0
        %691 = vmatpush.bf16.msra.mxu0 0
        %692 = vmatpush.bf16.msra.mxu0 0
        %693 = vmatpush.bf16.msra.mxu0 0
        %694 = vmatpush.bf16.msra.mxu0 0
        %695 = vmatpush.bf16.msra.mxu0 %v601
        %696 = vmatpush.bf16.msra.mxu0 %v600
        %697 = vmatpush.bf16.msra.mxu0 %v599
        %698 = vmatpush.bf16.msra.mxu0 %v598
        %699 = vmatmul.bf16.gmra.mxu0 %v680
        %v700 = vpop.f32.mrf.mxu0
        %v701 = vadd.f32 %v621, %v700
        %v702 = vpop.f32.mrf.mxu0
        %v703 = vadd.f32 %v626, %v702
        %704 = vmatmul.bf16.gmra.mxu0 %v683
        %v705 = vpop.f32.mrf.mxu0
        %v706 = vadd.f32 %v631, %v705
        %v707 = vpop.f32.mrf.mxu0
        %v708 = vadd.f32 %v636, %v707
        %709 = vmatmul.bf16.gmra.mxu0 %v686
        %v710 = vpop.f32.mrf.mxu0
        %v711 = vadd.f32 %v641, %v710
        %v712 = vpop.f32.mrf.mxu0
        %v713 = vadd.f32 %v646, %v712
        %714 = vmatmul.bf16.gmra.mxu0 %v689
        %v715 = vpop.f32.mrf.mxu0
        %v716 = vadd.f32 %v651, %v715
        %v717 = vpop.f32.mrf.mxu0
        %v718 = vadd.f32 %v656, %v717
        %719 = vdwg.mxu0
        %v720 = vsub.f32 0.0, %v701
        %v721 = vsub.f32 0.0, %v703
        %v722 = vsub.f32 0.0, %v706
        %v723 = vsub.f32 0.0, %v708
        %v724 = vsub.f32 0.0, %v711
        %v725 = vsub.f32 0.0, %v713
        %v726 = vsub.f32 0.0, %v716
        %v727 = vsub.f32 0.0, %v718
        %v728 = vmul.f32 %v720, 1.442695
        %v729 = vpow.pop %v728
        %v730 = vmul.f32 %v721, 1.442695
        %v731 = vpow.pop %v730
        %v732 = vmul.f32 %v722, 1.442695
        %v733 = vpow.pop %v732
        %v734 = vmul.f32 %v723, 1.442695
        %v735 = vpow.pop %v734
        %v736 = vmul.f32 %v724, 1.442695
        %v737 = vpow.pop %v736
        %v738 = vmul.f32 %v725, 1.442695
        %v739 = vpow.pop %v738
        %v740 = vmul.f32 %v726, 1.442695
        %v741 = vpow.pop %v740
        %v742 = vmul.f32 %v727, 1.442695
        %v743 = vpow.pop %v742
        %v744 = vadd.f32 %v729, 1.0
        %v745 = vadd.f32 %v731, 1.0
        %v746 = vadd.f32 %v733, 1.0
        %v747 = vadd.f32 %v735, 1.0
        %v748 = vadd.f32 %v737, 1.0
        %v749 = vadd.f32 %v739, 1.0
        %v750 = vadd.f32 %v741, 1.0
        %v751 = vadd.f32 %v743, 1.0
        %v752 = vrcp.pop %v744
        %v753 = vmul.f32 %v744, %v752
        %v754 = vsub.f32 1.0, %v753
        %v755 = vmul.f32 %v752, %v754
        %v756 = vadd.f32 %v752, %v755
        %vm757 = vweird.f32 %v744
        %vm758 = vweird.f32 %v752
        %vm759 = vmor %vm757, %vm758
        %v760 = vsel %vm759, %v752, %v756
        %v761 = vand.u32 2147483647, %v744
        %vm762 = vcmp.eq.f32.partialorder %v761, 8.507059e+37
        %v763 = vand.u32 %v744, 2147483648
        %v764 = vor.u32 1.1754944e-38, %v763
        %v765 = vsel %vm762, %v764, %v760
        %v766 = vrcp.pop %v745
        %v767 = vmul.f32 %v745, %v766
        %v768 = vsub.f32 1.0, %v767
        %v769 = vmul.f32 %v766, %v768
        %v770 = vadd.f32 %v766, %v769
        %vm771 = vweird.f32 %v745
        %vm772 = vweird.f32 %v766
        %vm773 = vmor %vm771, %vm772
        %v774 = vsel %vm773, %v766, %v770
        %v775 = vand.u32 2147483647, %v745
        %vm776 = vcmp.eq.f32.partialorder %v775, 8.507059e+37
        %v777 = vand.u32 %v745, 2147483648
        %v778 = vor.u32 1.1754944e-38, %v777
        %v779 = vsel %vm776, %v778, %v774
        %v780 = vrcp.pop %v746
        %v781 = vmul.f32 %v746, %v780
        %v782 = vsub.f32 1.0, %v781
        %v783 = vmul.f32 %v780, %v782
        %v784 = vadd.f32 %v780, %v783
        %vm785 = vweird.f32 %v746
        %vm786 = vweird.f32 %v780
        %vm787 = vmor %vm785, %vm786
        %v788 = vsel %vm787, %v780, %v784
        %v789 = vand.u32 2147483647, %v746
        %vm790 = vcmp.eq.f32.partialorder %v789, 8.507059e+37
        %v791 = vand.u32 %v746, 2147483648
        %v792 = vor.u32 1.1754944e-38, %v791
        %v793 = vsel %vm790, %v792, %v788
        %v794 = vrcp.pop %v747
        %v795 = vmul.f32 %v747, %v794
        %v796 = vsub.f32 1.0, %v795
        %v797 = vmul.f32 %v794, %v796
        %v798 = vadd.f32 %v794, %v797
        %vm799 = vweird.f32 %v747
        %vm800 = vweird.f32 %v794
        %vm801 = vmor %vm799, %vm800
        %v802 = vsel %vm801, %v794, %v798
        %v803 = vand.u32 2147483647, %v747
        %vm804 = vcmp.eq.f32.partialorder %v803, 8.507059e+37
        %v805 = vand.u32 %v747, 2147483648
        %v806 = vor.u32 1.1754944e-38, %v805
        %v807 = vsel %vm804, %v806, %v802
        %v808 = vrcp.pop %v748
        %v809 = vmul.f32 %v748, %v808
        %v810 = vsub.f32 1.0, %v809
        %v811 = vmul.f32 %v808, %v810
        %v812 = vadd.f32 %v808, %v811
        %vm813 = vweird.f32 %v748
        %vm814 = vweird.f32 %v808
        %vm815 = vmor %vm813, %vm814
        %v816 = vsel %vm815, %v808, %v812
        %v817 = vand.u32 2147483647, %v748
        %vm818 = vcmp.eq.f32.partialorder %v817, 8.507059e+37
        %v819 = vand.u32 %v748, 2147483648
        %v820 = vor.u32 1.1754944e-38, %v819
        %v821 = vsel %vm818, %v820, %v816
        %v822 = vrcp.pop %v749
        %v823 = vmul.f32 %v749, %v822
        %v824 = vsub.f32 1.0, %v823
        %v825 = vmul.f32 %v822, %v824
        %v826 = vadd.f32 %v822, %v825
        %vm827 = vweird.f32 %v749
        %vm828 = vweird.f32 %v822
        %vm829 = vmor %vm827, %vm828
        %v830 = vsel %vm829, %v822, %v826
        %v831 = vand.u32 2147483647, %v749
        %vm832 = vcmp.eq.f32.partialorder %v831, 8.507059e+37
        %v833 = vand.u32 %v749, 2147483648
        %v834 = vor.u32 1.1754944e-38, %v833
        %v835 = vsel %vm832, %v834, %v830
        %v836 = vrcp.pop %v750
        %v837 = vmul.f32 %v750, %v836
        %v838 = vsub.f32 1.0, %v837
        %v839 = vmul.f32 %v836, %v838
        %v840 = vadd.f32 %v836, %v839
        %vm841 = vweird.f32 %v750
        %vm842 = vweird.f32 %v836
        %vm843 = vmor %vm841, %vm842
        %v844 = vsel %vm843, %v836, %v840
        %v845 = vand.u32 2147483647, %v750
        %vm846 = vcmp.eq.f32.partialorder %v845, 8.507059e+37
        %v847 = vand.u32 %v750, 2147483648
        %v848 = vor.u32 1.1754944e-38, %v847
        %v849 = vsel %vm846, %v848, %v844
        %v850 = vrcp.pop %v751
        %v851 = vmul.f32 %v751, %v850
        %v852 = vsub.f32 1.0, %v851
        %v853 = vmul.f32 %v850, %v852
        %v854 = vadd.f32 %v850, %v853
        %vm855 = vweird.f32 %v751
        %vm856 = vweird.f32 %v850
        %vm857 = vmor %vm855, %vm856
        %v858 = vsel %vm857, %v850, %v854
        %v859 = vand.u32 2147483647, %v751
        %vm860 = vcmp.eq.f32.partialorder %v859, 8.507059e+37
        %v861 = vand.u32 %v751, 2147483648
        %v862 = vor.u32 1.1754944e-38, %v861
        %v863 = vsel %vm860, %v862, %v858
        %v864 = vmul.f32 %v701, %v765
        %v865 = vmul.f32 %v703, %v779
        %v866 = vmul.f32 %v706, %v793
        %v867 = vmul.f32 %v708, %v807
        %v868 = vmul.f32 %v711, %v821
        %v869 = vmul.f32 %v713, %v835
        %v870 = vmul.f32 %v716, %v849
        %v871 = vmul.f32 %v718, %v863
        %v872 = vpack.c.bf16 %v865, %v864
        %v873 = vpack.c.bf16 %v867, %v866
        %v874 = vpack.c.bf16 %v869, %v868
        %v875 = vpack.c.bf16 %v871, %v870
        %s876 = scalar_lea.vmem %s3, 32
        %v877 = vld [vmem:[%s876] sm:$0xf]
        %v878 = vld [vmem:[%s876 + $0x4] sm:$0xf]
        %v879 = vld [vmem:[%s876 + $0x8] sm:$0xf]
        %v880 = vld [vmem:[%s876 + $0xc] sm:$0xf]
        %v881 = vld [vmem:[%s876 + $0x10] sm:$0xf]
        %v882 = vld [vmem:[%s876 + $0x14] sm:$0xf]
        %v883 = vld [vmem:[%s876 + $0x18] sm:$0xf]
        %v884 = vld [vmem:[%s876 + $0x1c] sm:$0xf]
        %s885 = scalar_lea.vmem %s4, 64
        %v886 = vld [vmem:[%s885] sm:$0xff]
        %v887 = vld [vmem:[%s885 + $0x8] sm:$0xff]
        %v888 = vld [vmem:[%s885 + $0x10] sm:$0xff]
        %v889 = vld [vmem:[%s885 + $0x18] sm:$0xff]
        %v890 = vld [vmem:[%s885 + $0x20] sm:$0xff]
        %v891 = vld [vmem:[%s885 + $0x28] sm:$0xff]
        %v892 = vld [vmem:[%s885 + $0x30] sm:$0xff]
        %v893 = vld [vmem:[%s885 + $0x38] sm:$0xff]
        %895 = vset.pattern.permute.xlu0 0
        %896 = vperm.xlu0 %895, %v886
        %v897 = vpop.permute.xlu0 %896
        %900 = vset.pattern.permute.xlu0 0
        %901 = vperm.xlu0 %900, %v887
        %v902 = vpop.permute.xlu0 %901
        %905 = vset.pattern.permute.xlu0 0
        %906 = vperm.xlu0 %905, %v888
        %v907 = vpop.permute.xlu0 %906
        %910 = vset.pattern.permute.xlu0 0
        %911 = vperm.xlu0 %910, %v889
        %v912 = vpop.permute.xlu0 %911
        %915 = vset.pattern.permute.xlu0 0
        %916 = vperm.xlu0 %915, %v890
        %v917 = vpop.permute.xlu0 %916
        %920 = vset.pattern.permute.xlu0 0
        %921 = vperm.xlu0 %920, %v891
        %v922 = vpop.permute.xlu0 %921
        %925 = vset.pattern.permute.xlu0 0
        %926 = vperm.xlu0 %925, %v892
        %v927 = vpop.permute.xlu0 %926
        %930 = vset.pattern.permute.xlu0 0
        %931 = vperm.xlu0 %930, %v893
        %v932 = vpop.permute.xlu0 %931
        %v942 = vunpack.c.l.b16 %v877
        %v943 = vunpack.c.l.b16 %v878
        %v944 = vunpack.c.l.b16 %v879
        %v945 = vunpack.c.l.b16 %v880
        %v946 = vunpack.c.l.b16 %v881
        %v947 = vunpack.c.l.b16 %v882
        %v948 = vunpack.c.l.b16 %v883
        %v949 = vunpack.c.l.b16 %v884
        %v950 = vpack.c.b16 %v943, %v942
        %v951 = vpack.c.b16 %v945, %v944
        %v952 = vpack.c.b16 %v947, %v946
        %v953 = vpack.c.b16 %v949, %v948
        %v955 = vsel %vm678, %v950, 0
        %v958 = vsel %vm678, %v951, 0
        %v961 = vsel %vm678, %v952, 0
        %v964 = vsel %vm678, %v953, 0
        %966 = vmatpush.bf16.msra.mxu0 0
        %967 = vmatpush.bf16.msra.mxu0 0
        %968 = vmatpush.bf16.msra.mxu0 0
        %969 = vmatpush.bf16.msra.mxu0 0
        %970 = vmatpush.bf16.msra.mxu0 %v875
        %971 = vmatpush.bf16.msra.mxu0 %v874
        %972 = vmatpush.bf16.msra.mxu0 %v873
        %973 = vmatpush.bf16.msra.mxu0 %v872
        %974 = vmatmul.bf16.gmra.mxu0 %v955
        %v975 = vpop.f32.mrf.mxu0
        %v976 = vadd.f32 %v897, %v975
        %v977 = vpop.f32.mrf.mxu0
        %v978 = vadd.f32 %v902, %v977
        %979 = vmatmul.bf16.gmra.mxu0 %v958
        %v980 = vpop.f32.mrf.mxu0
        %v981 = vadd.f32 %v907, %v980
        %v982 = vpop.f32.mrf.mxu0
        %v983 = vadd.f32 %v912, %v982
        %984 = vmatmul.bf16.gmra.mxu0 %v961
        %v985 = vpop.f32.mrf.mxu0
        %v986 = vadd.f32 %v917, %v985
        %v987 = vpop.f32.mrf.mxu0
        %v988 = vadd.f32 %v922, %v987
        %989 = vmatmul.bf16.gmra.mxu0 %v964
        %v990 = vpop.f32.mrf.mxu0
        %v991 = vadd.f32 %v927, %v990
        %v992 = vpop.f32.mrf.mxu0
        %v993 = vadd.f32 %v932, %v992
        %994 = vdwg.mxu0
        %v995 = vsub.f32 0.0, %v976
        %v996 = vsub.f32 0.0, %v978
        %v997 = vsub.f32 0.0, %v981
        %v998 = vsub.f32 0.0, %v983
        %v999 = vsub.f32 0.0, %v986
        %v1000 = vsub.f32 0.0, %v988
        %v1001 = vsub.f32 0.0, %v991
        %v1002 = vsub.f32 0.0, %v993
        %v1003 = vmul.f32 %v995, 1.442695
        %v1004 = vpow.pop %v1003
        %v1005 = vmul.f32 %v996, 1.442695
        %v1006 = vpow.pop %v1005
        %v1007 = vmul.f32 %v997, 1.442695
        %v1008 = vpow.pop %v1007
        %v1009 = vmul.f32 %v998, 1.442695
        %v1010 = vpow.pop %v1009
        %v1011 = vmul.f32 %v999, 1.442695
        %v1012 = vpow.pop %v1011
        %v1013 = vmul.f32 %v1000, 1.442695
        %v1014 = vpow.pop %v1013
        %v1015 = vmul.f32 %v1001, 1.442695
        %v1016 = vpow.pop %v1015
        %v1017 = vmul.f32 %v1002, 1.442695
        %v1018 = vpow.pop %v1017
        %v1019 = vadd.f32 %v1004, 1.0
        %v1020 = vadd.f32 %v1006, 1.0
        %v1021 = vadd.f32 %v1008, 1.0
        %v1022 = vadd.f32 %v1010, 1.0
        %v1023 = vadd.f32 %v1012, 1.0
        %v1024 = vadd.f32 %v1014, 1.0
        %v1025 = vadd.f32 %v1016, 1.0
        %v1026 = vadd.f32 %v1018, 1.0
        %v1027 = vrcp.pop %v1019
        %v1028 = vmul.f32 %v1019, %v1027
        %v1029 = vsub.f32 1.0, %v1028
        %v1030 = vmul.f32 %v1027, %v1029
        %v1031 = vadd.f32 %v1027, %v1030
        %vm1032 = vweird.f32 %v1019
        %vm1033 = vweird.f32 %v1027
        %vm1034 = vmor %vm1032, %vm1033
        %v1035 = vsel %vm1034, %v1027, %v1031
        %v1036 = vand.u32 2147483647, %v1019
        %vm1037 = vcmp.eq.f32.partialorder %v1036, 8.507059e+37
        %v1038 = vand.u32 %v1019, 2147483648
        %v1039 = vor.u32 1.1754944e-38, %v1038
        %v1040 = vsel %vm1037, %v1039, %v1035
        %v1041 = vrcp.pop %v1020
        %v1042 = vmul.f32 %v1020, %v1041
        %v1043 = vsub.f32 1.0, %v1042
        %v1044 = vmul.f32 %v1041, %v1043
        %v1045 = vadd.f32 %v1041, %v1044
        %vm1046 = vweird.f32 %v1020
        %vm1047 = vweird.f32 %v1041
        %vm1048 = vmor %vm1046, %vm1047
        %v1049 = vsel %vm1048, %v1041, %v1045
        %v1050 = vand.u32 2147483647, %v1020
        %vm1051 = vcmp.eq.f32.partialorder %v1050, 8.507059e+37
        %v1052 = vand.u32 %v1020, 2147483648
        %v1053 = vor.u32 1.1754944e-38, %v1052
        %v1054 = vsel %vm1051, %v1053, %v1049
        %v1055 = vrcp.pop %v1021
        %v1056 = vmul.f32 %v1021, %v1055
        %v1057 = vsub.f32 1.0, %v1056
        %v1058 = vmul.f32 %v1055, %v1057
        %v1059 = vadd.f32 %v1055, %v1058
        %vm1060 = vweird.f32 %v1021
        %vm1061 = vweird.f32 %v1055
        %vm1062 = vmor %vm1060, %vm1061
        %v1063 = vsel %vm1062, %v1055, %v1059
        %v1064 = vand.u32 2147483647, %v1021
        %vm1065 = vcmp.eq.f32.partialorder %v1064, 8.507059e+37
        %v1066 = vand.u32 %v1021, 2147483648
        %v1067 = vor.u32 1.1754944e-38, %v1066
        %v1068 = vsel %vm1065, %v1067, %v1063
        %v1069 = vrcp.pop %v1022
        %v1070 = vmul.f32 %v1022, %v1069
        %v1071 = vsub.f32 1.0, %v1070
        %v1072 = vmul.f32 %v1069, %v1071
        %v1073 = vadd.f32 %v1069, %v1072
        %vm1074 = vweird.f32 %v1022
        %vm1075 = vweird.f32 %v1069
        %vm1076 = vmor %vm1074, %vm1075
        %v1077 = vsel %vm1076, %v1069, %v1073
        %v1078 = vand.u32 2147483647, %v1022
        %vm1079 = vcmp.eq.f32.partialorder %v1078, 8.507059e+37
        %v1080 = vand.u32 %v1022, 2147483648
        %v1081 = vor.u32 1.1754944e-38, %v1080
        %v1082 = vsel %vm1079, %v1081, %v1077
        %v1083 = vrcp.pop %v1023
        %v1084 = vmul.f32 %v1023, %v1083
        %v1085 = vsub.f32 1.0, %v1084
        %v1086 = vmul.f32 %v1083, %v1085
        %v1087 = vadd.f32 %v1083, %v1086
        %vm1088 = vweird.f32 %v1023
        %vm1089 = vweird.f32 %v1083
        %vm1090 = vmor %vm1088, %vm1089
        %v1091 = vsel %vm1090, %v1083, %v1087
        %v1092 = vand.u32 2147483647, %v1023
        %vm1093 = vcmp.eq.f32.partialorder %v1092, 8.507059e+37
        %v1094 = vand.u32 %v1023, 2147483648
        %v1095 = vor.u32 1.1754944e-38, %v1094
        %v1096 = vsel %vm1093, %v1095, %v1091
        %v1097 = vrcp.pop %v1024
        %v1098 = vmul.f32 %v1024, %v1097
        %v1099 = vsub.f32 1.0, %v1098
        %v1100 = vmul.f32 %v1097, %v1099
        %v1101 = vadd.f32 %v1097, %v1100
        %vm1102 = vweird.f32 %v1024
        %vm1103 = vweird.f32 %v1097
        %vm1104 = vmor %vm1102, %vm1103
        %v1105 = vsel %vm1104, %v1097, %v1101
        %v1106 = vand.u32 2147483647, %v1024
        %vm1107 = vcmp.eq.f32.partialorder %v1106, 8.507059e+37
        %v1108 = vand.u32 %v1024, 2147483648
        %v1109 = vor.u32 1.1754944e-38, %v1108
        %v1110 = vsel %vm1107, %v1109, %v1105
        %v1111 = vrcp.pop %v1025
        %v1112 = vmul.f32 %v1025, %v1111
        %v1113 = vsub.f32 1.0, %v1112
        %v1114 = vmul.f32 %v1111, %v1113
        %v1115 = vadd.f32 %v1111, %v1114
        %vm1116 = vweird.f32 %v1025
        %vm1117 = vweird.f32 %v1111
        %vm1118 = vmor %vm1116, %vm1117
        %v1119 = vsel %vm1118, %v1111, %v1115
        %v1120 = vand.u32 2147483647, %v1025
        %vm1121 = vcmp.eq.f32.partialorder %v1120, 8.507059e+37
        %v1122 = vand.u32 %v1025, 2147483648
        %v1123 = vor.u32 1.1754944e-38, %v1122
        %v1124 = vsel %vm1121, %v1123, %v1119
        %v1125 = vrcp.pop %v1026
        %v1126 = vmul.f32 %v1026, %v1125
        %v1127 = vsub.f32 1.0, %v1126
        %v1128 = vmul.f32 %v1125, %v1127
        %v1129 = vadd.f32 %v1125, %v1128
        %vm1130 = vweird.f32 %v1026
        %vm1131 = vweird.f32 %v1125
        %vm1132 = vmor %vm1130, %vm1131
        %v1133 = vsel %vm1132, %v1125, %v1129
        %v1134 = vand.u32 2147483647, %v1026
        %vm1135 = vcmp.eq.f32.partialorder %v1134, 8.507059e+37
        %v1136 = vand.u32 %v1026, 2147483648
        %v1137 = vor.u32 1.1754944e-38, %v1136
        %v1138 = vsel %vm1135, %v1137, %v1133
        %v1139 = vmul.f32 %v976, %v1040
        %v1140 = vmul.f32 %v978, %v1054
        %v1141 = vmul.f32 %v981, %v1068
        %v1142 = vmul.f32 %v983, %v1082
        %v1143 = vmul.f32 %v986, %v1096
        %v1144 = vmul.f32 %v988, %v1110
        %v1145 = vmul.f32 %v991, %v1124
        %v1146 = vmul.f32 %v993, %v1138
        %v1147 = vpack.c.bf16 %v1140, %v1139
        %v1148 = vpack.c.bf16 %v1142, %v1141
        %v1149 = vpack.c.bf16 %v1144, %v1143
        %v1150 = vpack.c.bf16 %v1146, %v1145
        %v1151 = vld [vmem:[%s5] sm:$0xf]
        %v1152 = vld [vmem:[%s6] sm:$0xff]
        %1154 = vset.pattern.permute.xlu0 0
        %1155 = vperm.xlu0 %1154, %v1152
        %v1156 = vpop.permute.xlu0 %1155
        %v1159 = vsel %vm678, %v1151, 0
        %1161 = vmatpush.bf16.msra.mxu0 0
        %1162 = vmatpush.bf16.msra.mxu0 0
        %1163 = vmatpush.bf16.msra.mxu0 0
        %1164 = vmatpush.bf16.msra.mxu0 0
        %1165 = vmatpush.bf16.msra.mxu0 %v1150
        %1166 = vmatpush.bf16.msra.mxu0 %v1149
        %1167 = vmatpush.bf16.msra.mxu0 %v1148
        %1168 = vmatpush.bf16.msra.mxu0 %v1147
        %1169 = vmatmul.bf16.gmra.mxu0 %v1159
        %v1170 = vpop.f32.mrf.mxu0
        %v1171 = vadd.f32 %v1156, %v1170
        %v1172 = vpop.f32.mrf.mxu0
        %1173 = vdwg.mxu0
        %1174 = vst [vmem:[%s272] sm:$0xff] %v1171
        %s1175 = sand.u32 %s181, 1
        %s1176 = scalar_lea.sflag [#allocation3], %s1175
        %s1177 = sand.u32 %s181, 1
        %s1178 = smul.addr %s1177, 8
        %s1179 = scalar_lea.vmem [#allocation2], %s1178
        // Predicated region
        $region49: #{tpu_custom_call.1} parent=47 // pred_check
          %p1180 = pneg %p191
        $region50: #{tpu_custom_call.1} parent=47 // pred_check_branch
          %1182 = sbr.rel (%p1180) target = $region52
        $region51: #{tpu_custom_call.1} parent=47 // pred_region
          %1184 = vsyncadd %s1176, 0
          %s1185 = smul.addr %s21, 8
          %s1186 = scalar_lea.hbm %s7, %s1185
          %s1188 = sshll.u32 %s1179, 4
          %s1189 = int_to_ptr.vmem [resolvable:$true] %s1188
          %s1190 = sshll.u32 %s1186, 4
          %s1191 = int_to_ptr.hbm [resolvable:$true] %s1190
          %1193 = dma.vmem_to_hbm [thread:$0]  %s1189, 128, %s1191, %s1176
        $region52: #{tpu_custom_call.1} parent=47 // pred_fallthru
          _
      $region48: #{tpu_custom_call.1} parent=5 // pred_fallthru
        _
      %p1194 = scmp.le.s32.totalorder 2, %s16
      // Predicated region
      $region53: #{tpu_custom_call.1} parent=5 // pred_check
        %p1195 = pneg %p1194
      $region54: #{tpu_custom_call.1} parent=5 // pred_check_branch
        %1197 = sbr.rel (%p1195) target = $region56
      $region55: #{tpu_custom_call.1} parent=5 // pred_region
        %s1198 = ssub.s32 %s16, 2
        // Predicated region
        $region57: #{tpu_custom_call.1} parent=55 // pred_check
          %p1199 = pneg %p197
        $region58: #{tpu_custom_call.1} parent=55 // pred_check_branch
          %1201 = sbr.rel (%p1199) target = $region60
        $region59: #{tpu_custom_call.1} parent=55 // pred_region
          %s1202 = sand.u32 %s182, 1
          %s1203 = scalar_lea.sflag [#allocation3], %s1202
          %s1204 = sand.u32 %s182, 1
          %s1205 = smul.addr %s1204, 8
          %s1206 = scalar_lea.vmem [#allocation2], %s1205
          %1208 = dma.done %s1203, 128
        $region60: #{tpu_custom_call.1} parent=55 // pred_fallthru
          _
      $region56: #{tpu_custom_call.1} parent=5 // pred_fallthru
        _
    $region6: #{tpu_custom_call.1} parent=1 // loop_footer
      %s20 = sadd.s32 1, %s16
    $region7: #{tpu_custom_call.1} parent=1 // loop_footer_branch
      %15 = sbr.rel target = $region3
    $region8: #{tpu_custom_call.1} parent=1 // loop_exit
      _
    %1209 = vsyncpa [#allocation3], 1
    %s1210 = scalar_lea.sflag [#allocation3], 1
    %1211 = vsyncpa %s1210, 1

</llo_original>
